<compile_context>
chip_gen: v7x
topology: tpu7x:2x2x1
jax: 0.10.0
libtpu: 0.0.40
codegen_flags: <defaults>
</compile_context>

<pallas_src>
import jax
import jax.numpy as jnp
from jax import lax
from jax.experimental import pallas as pl
from jax.experimental.pallas import tpu as pltpu


def _make_mf_kernel(chunk, n_chunks):
    """Fused 2-layer MLP kernel over one node-major tile."""

    def kernel(x_ref, w1t_ref, b1_ref, w2t_ref, b2_ref, o_ref):
        # x_ref  : (TILE_N, IN)   node-major embedding tile
        # w1t_ref: (IN, HID)      first-layer weight, pre-transposed
        # b1_ref : (1, HID)
        # w2t_ref: (HID, OUT)     last-layer weight, pre-transposed
        # b2_ref : (1, OUT)
        # o_ref  : (TILE_N, OUT)  node-major output tile
        w1t = w1t_ref[...]
        w2t = w2t_ref[...]
        b1 = b1_ref[...]
        b2 = b2_ref[...]

        def compute(rows):
            x = x_ref[rows, :]
            h = jnp.dot(x, w1t, preferred_element_type=jnp.float32)
            h = jnp.maximum(h + b1, 0.0)          # ReLU
            # dropout(training=False) is identity -> nothing to emit.
            y = jnp.dot(h, w2t, preferred_element_type=jnp.float32)
            o_ref[rows, :] = (y + b2).astype(o_ref.dtype)

        if n_chunks == 1:
            compute(slice(None))
        else:
            def body(c, carry):
                start = pl.multiple_of(c * chunk, chunk)
                compute(pl.ds(start, chunk))
                return carry
            lax.fori_loop(0, n_chunks, body, 0)

    return kernel


def _default_tile(node_num):
    # Big lane-contiguous node tiles (amortize per-step overhead), but keep
    # the grid >= 2 steps when there is enough work for megacore sharding.
    if node_num <= 512:
        half = max(8, (node_num + 1) // 2)
        return ((half + 7) // 8) * 8
    return int(min(2048, ((pl.cdiv(node_num, 2) + 255) // 256) * 256))


def mf_forward(emb_weight, w1, b1, w2, b2, *, tile_n=None):
    """Fused MLP over node embeddings.

    emb_weight: (node_num, in_channels)
    w1: (hidden, in)  b1: (hidden,)   -- PyTorch Linear layout
    w2: (out, hidden) b2: (out,)
    returns: (node_num, out)
    """
    node_num, in_ch = emb_weight.shape
    hidden = w1.shape[0]
    out_ch = w2.shape[0]

    if tile_n is None:
        tile_n = _default_tile(node_num)
    tile_n = int(tile_n)
    grid_n = pl.cdiv(node_num, tile_n)
    padded_n = grid_n * tile_n

    x = emb_weight
    if padded_n != node_num:
        # Row padding only: padded rows produce independent garbage rows that
        # are sliced off below; they never contaminate valid rows.
        x = jnp.pad(x, ((0, padded_n - node_num), (0, 0)))

    # One-time (parameter-side) layout prep: transpose the tiny weights so the
    # kernel does plain (rows, K) @ (K, cols) matmuls; biases as broadcast rows.
    w1t = w1.T                       # (in, hidden)
    w2t = w2.T                       # (hidden, out)
    b1r = b1.reshape(1, hidden)
    b2r = b2.reshape(1, out_ch)

    chunk = min(256, tile_n)
    assert tile_n % chunk == 0
    n_chunks = tile_n // chunk

    out = pl.pallas_call(
        _make_mf_kernel(chunk, n_chunks),
        out_shape=jax.ShapeDtypeStruct((padded_n, out_ch), emb_weight.dtype),
        grid_spec=pl.GridSpec(
            grid=(grid_n,),
            in_specs=[
                pl.BlockSpec((tile_n, in_ch), lambda i: (i, 0)),   # x tile
                pl.BlockSpec((in_ch, hidden), lambda i: (0, 0)),   # W1^T (resident)
                pl.BlockSpec((1, hidden), lambda i: (0, 0)),       # b1
                pl.BlockSpec((hidden, out_ch), lambda i: (0, 0)),  # W2^T (resident)
                pl.BlockSpec((1, out_ch), lambda i: (0, 0)),       # b2
            ],
            out_specs=pl.BlockSpec((tile_n, out_ch), lambda i: (i, 0)),
        ),
        compiler_params=pltpu.CompilerParams(
            dimension_semantics=("parallel",)),
    )(x, w1t, b1r, w2t, b2r)

    if padded_n != node_num:
        out = out[:node_num]
    return out


if __name__ == "__main__":
    # Module config (synthetic, deterministic init):
    #   node_num=256, in_channels=16, hidden_channels=32, out_channels=8,
    #   num_layers=2, dropout=0.5 (eval mode -> no-op), cat_node_feat_mf=False
    node_num, in_ch, hidden, out_ch = 256, 16, 32, 8

    key = jax.random.PRNGKey(0)
    k_emb, k_w1, k_b1, k_w2, k_b2 = jax.random.split(key, 5)

    # nn.Embedding default init: N(0, 1)
    emb_weight = jax.random.normal(k_emb, (node_num, in_ch), dtype=jnp.float32)

    # nn.Linear default init: U(-1/sqrt(fan_in), 1/sqrt(fan_in))
    bnd1 = 1.0 / jnp.sqrt(in_ch)
    w1 = jax.random.uniform(k_w1, (hidden, in_ch), jnp.float32, -bnd1, bnd1)
    b1 = jax.random.uniform(k_b1, (hidden,), jnp.float32, -bnd1, bnd1)
    bnd2 = 1.0 / jnp.sqrt(hidden)
    w2 = jax.random.uniform(k_w2, (out_ch, hidden), jnp.float32, -bnd2, bnd2)
    b2 = jax.random.uniform(k_b2, (out_ch,), jnp.float32, -bnd2, bnd2)

    out = mf_forward(emb_weight, w1, b1, w2, b2)
    out = jax.block_until_ready(out)

    # Pure-JAX reference check of the forward semantics (eval mode).
    ref = jnp.maximum(emb_weight @ w1.T + b1, 0.0) @ w2.T + b2
    assert out.shape == (node_num, out_ch)
    assert jnp.allclose(out, ref, atol=1e-5, rtol=1e-5)

    print("KERNEL_OK")
</pallas_src>

<mosaic_0001>
module attributes {stable_mosaic.version = 11 : i64} {
  func.func @kernel(%arg0: i32, %arg1: memref<128x16xf32, #tpu.memory_space<vmem>>, %arg2: memref<16x32xf32, #tpu.memory_space<vmem>>, %arg3: memref<1x32xf32, #tpu.memory_space<vmem>>, %arg4: memref<32x8xf32, #tpu.memory_space<vmem>>, %arg5: memref<1x8xf32, #tpu.memory_space<vmem>>, %arg6: memref<128x8xf32, #tpu.memory_space<vmem>>) attributes {dimension_semantics = [#tpu.dimension_semantics<parallel>], iteration_bounds = array<i64: 2>, scalar_prefetch = 0 : i64, scratch_operands = 0 : i64, tpu.core_type = #tpu.core_type<tc>, window_params = [{transform_indices = @transform_0, window_bounds = array<i64: 128, 16>}, {pipeline_mode = #tpu.pipeline_mode<synchronous>, transform_indices = @transform_1, window_bounds = array<i64: 16, 32>}, {pipeline_mode = #tpu.pipeline_mode<synchronous>, transform_indices = @transform_2, window_bounds = array<i64: 1, 32>}, {pipeline_mode = #tpu.pipeline_mode<synchronous>, transform_indices = @transform_3, window_bounds = array<i64: 32, 8>}, {pipeline_mode = #tpu.pipeline_mode<synchronous>, transform_indices = @transform_4, window_bounds = array<i64: 1, 8>}, {transform_indices = @transform_5, window_bounds = array<i64: 128, 8>}]} {
    %c0 = arith.constant 0 : index
    %c0_0 = arith.constant 0 : index
    %0 = vector.load %arg2[%c0, %c0_0] : memref<16x32xf32, #tpu.memory_space<vmem>>, vector<16x32xf32>
    %c0_1 = arith.constant 0 : index
    %c0_2 = arith.constant 0 : index
    %1 = vector.load %arg4[%c0_1, %c0_2] : memref<32x8xf32, #tpu.memory_space<vmem>>, vector<32x8xf32>
    %c0_3 = arith.constant 0 : index
    %c0_4 = arith.constant 0 : index
    %2 = vector.load %arg3[%c0_3, %c0_4] : memref<1x32xf32, #tpu.memory_space<vmem>>, vector<1x32xf32>
    %c0_5 = arith.constant 0 : index
    %c0_6 = arith.constant 0 : index
    %3 = vector.load %arg5[%c0_5, %c0_6] : memref<1x8xf32, #tpu.memory_space<vmem>>, vector<1x8xf32>
    %c0_7 = arith.constant 0 : index
    %c0_8 = arith.constant 0 : index
    %4 = vector.load %arg1[%c0_7, %c0_8] : memref<128x16xf32, #tpu.memory_space<vmem>>, vector<128x16xf32>
    %cst = arith.constant dense<0.000000e+00> : vector<128x32xf32>
    %5 = tpu.matmul %4, %0, %cst {dimension_numbers = #tpu.dot_dimension_numbers<[1], [0], [0], [1], [0, 0, 1, 1], [], []>} : vector<128x16xf32>, vector<16x32xf32>, vector<128x32xf32> -> vector<128x32xf32>
    %6 = vector.broadcast %2 : vector<1x32xf32> to vector<128x32xf32>
    %7 = arith.addf %5, %6 : vector<128x32xf32>
    %cst_9 = arith.constant 0.000000e+00 : f32
    %8 = vector.broadcast %cst_9 : f32 to vector<128x32xf32>
    %9 = arith.maximumf %7, %8 : vector<128x32xf32>
    %cst_10 = arith.constant dense<0.000000e+00> : vector<128x8xf32>
    %10 = tpu.matmul %9, %1, %cst_10 {dimension_numbers = #tpu.dot_dimension_numbers<[1], [0], [0], [1], [0, 0, 1, 1], [], []>} : vector<128x32xf32>, vector<32x8xf32>, vector<128x8xf32> -> vector<128x8xf32>
    %11 = vector.broadcast %3 : vector<1x8xf32> to vector<128x8xf32>
    %12 = arith.addf %10, %11 : vector<128x8xf32>
    %c0_11 = arith.constant 0 : index
    %c0_12 = arith.constant 0 : index
    %13 = vector.load %arg6[%c0_11, %c0_12] : memref<128x8xf32, #tpu.memory_space<vmem>>, vector<128x8xf32>
    tpu.vector_store %arg6[%c0_11, %c0_12], %12 {strides = array<i32>} : memref<128x8xf32, #tpu.memory_space<vmem>>, vector<128x8xf32>,
    return
  }
  func.func @transform_0(%arg0: i32) -> (i32, i32) {
    %c0_i32 = arith.constant 0 : i32
    %c0_i32_0 = arith.constant 0 : i32
    return %arg0, %c0_i32 : i32, i32
  }
  func.func @transform_1(%arg0: i32) -> (i32, i32) {
    %c0_i32 = arith.constant 0 : i32
    %c0_i32_0 = arith.constant 0 : i32
    %c0_i32_1 = arith.constant 0 : i32
    return %c0_i32, %c0_i32_0 : i32, i32
  }
  func.func @transform_2(%arg0: i32) -> (i32, i32) {
    %c0_i32 = arith.constant 0 : i32
    %c0_i32_0 = arith.constant 0 : i32
    %c0_i32_1 = arith.constant 0 : i32
    return %c0_i32, %c0_i32_0 : i32, i32
  }
  func.func @transform_3(%arg0: i32) -> (i32, i32) {
    %c0_i32 = arith.constant 0 : i32
    %c0_i32_0 = arith.constant 0 : i32
    %c0_i32_1 = arith.constant 0 : i32
    return %c0_i32, %c0_i32_0 : i32, i32
  }
  func.func @transform_4(%arg0: i32) -> (i32, i32) {
    %c0_i32 = arith.constant 0 : i32
    %c0_i32_0 = arith.constant 0 : i32
    %c0_i32_1 = arith.constant 0 : i32
    return %c0_i32, %c0_i32_0 : i32, i32
  }
  func.func @transform_5(%arg0: i32) -> (i32, i32) {
    %c0_i32 = arith.constant 0 : i32
    %c0_i32_0 = arith.constant 0 : i32
    return %arg0, %c0_i32 : i32, i32
  }
}

</mosaic_0001>

<llo_original>
// kernel: tpu_custom_call.1
$region0: #{tpu_custom_call.1}
  #allocation0 [shape = 'u32[]', space=smem, size = 0x4, offset = 0x4, fixed_abs, tag = 'smem constant byte address 0x4 - core index']
  #allocation1 [shape = 'u32[144,128]{1,0:T(1,128)}', space=vmem, size = 0x12000, scoped, tag = 'internal scratch']
  %s0 = inlined_call_operand.vmem [shape: f32[256,16], index: 0, kind: input, shape index: {}]
  %s1 = inlined_call_operand.vmem [shape: f32[16,32], index: 1, kind: input, shape index: {}]
  %s2 = inlined_call_operand.vmem [shape: f32[1,32], index: 2, kind: input, shape index: {}]
  %s3 = inlined_call_operand.vmem [shape: f32[32,8], index: 3, kind: input, shape index: {}]
  %s4 = inlined_call_operand.vmem [shape: f32[1,8], index: 4, kind: input, shape index: {}]
  %s5 = inlined_call_operand.vmem [shape: f32[256,8], index: 5, kind: output, shape index: {}]
  %s6 = sld [smem:[#allocation0]]
  $region53: #{tpu_custom_call.1} parent=0
    _
  %s8 = ssub.s32 1, %s6
  %s9 = scalar_select 0, %s8, %s6
  loop: start=0, step=1, limit=4
  $region2: #{tpu_custom_call.1} parent=0 // loop_pre_header
    _
  $region3: #{tpu_custom_call.1} parent=0 // loop_header
    %s11 = sphi 0, %s15
    %p12 = scmp.ge.s32.totalorder %s11, 4
    %s21 = sphi 0, %s23
    %s24 = sphi 0, %s21
    %s25 = sphi 0, %s24
    %s41 = sphi 0, %s25
    %s45 = sphi 0, %s45
    %s47 = sphi 0, %s45
    %s48 = sphi 0, %s47
    %s62 = sphi 0, %s48
    %s66 = sphi 0, %s66
    %s68 = sphi 0, %s66
    %s69 = sphi 0, %s68
    %s83 = sphi 0, %s69
    %s87 = sphi 0, %s87
    %s89 = sphi 0, %s87
    %s90 = sphi 0, %s89
    %s104 = sphi 0, %s90
    %s108 = sphi 0, %s108
    %s110 = sphi 0, %s108
    %s111 = sphi 0, %s110
    %s125 = sphi 0, %s111
    %s131 = sphi 0, %s133
    %s134 = sphi 0, %s131
    %s135 = sphi 0, %s134
    %s151 = sphi 0, %s135
  $region4: #{tpu_custom_call.1} parent=0 // loop_header_branch
    %14 = sbr.rel (%p12) target = $region8
  $region5: #{tpu_custom_call.1} parent=0 // loop_body
    %s16 = ssub.s32 %s11, 1
    %s17 = ssub.s32 %s11, 2
    %s18 = sadd.s32 %s11, 1
    %s19 = ssub.s32 %s11, %s18
    %p20 = scmp.eq.s32.totalorder %s19, 0
    %s22 = sadd.s32 %s21, 1
    %s23 = scalar_select %p20, %s21, %s22
    %p26 = pneg %p20
    %p27 = scmp.eq.s32.totalorder %s11, 1
    %p28 = por %p26, %p27
    %p29 = scmp.ne.s32.totalorder %s21, %s24
    %p30 = scmp.eq.s32.totalorder %s11, 0
    %p31 = por %p29, %p30
    %p32 = scmp.ne.s32.totalorder %s21, %s24
    %p33 = scmp.eq.s32.totalorder %s16, 1
    %p34 = por %p32, %p33
    %p35 = scmp.ne.s32.totalorder %s24, %s25
    %p36 = scmp.eq.s32.totalorder %s16, 0
    %p37 = por %p35, %p36
    %p38 = scmp.ne.s32.totalorder %s24, %s25
    %p39 = scmp.eq.s32.totalorder %s17, 1
    %p40 = por %p38, %p39
    %p42 = scmp.ne.s32.totalorder %s25, %s41
    %p43 = scmp.eq.s32.totalorder %s17, 0
    %p44 = por %p42, %p43
    %s46 = sadd.s32 %s45, 1
    %p49 = scmp.eq.s32.totalorder %s11, 1
    %p50 = scmp.ne.s32.totalorder %s45, %s47
    %p51 = scmp.eq.s32.totalorder %s11, 0
    %p52 = por %p50, %p51
    %p53 = scmp.ne.s32.totalorder %s45, %s47
    %p54 = scmp.eq.s32.totalorder %s16, 1
    %p55 = por %p53, %p54
    %p56 = scmp.ne.s32.totalorder %s47, %s48
    %p57 = scmp.eq.s32.totalorder %s16, 0
    %p58 = por %p56, %p57
    %p59 = scmp.ne.s32.totalorder %s47, %s48
    %p60 = scmp.eq.s32.totalorder %s17, 1
    %p61 = por %p59, %p60
    %p63 = scmp.ne.s32.totalorder %s48, %s62
    %p64 = scmp.eq.s32.totalorder %s17, 0
    %p65 = por %p63, %p64
    %s67 = sadd.s32 %s66, 1
    %p70 = scmp.eq.s32.totalorder %s11, 1
    %p71 = scmp.ne.s32.totalorder %s66, %s68
    %p72 = scmp.eq.s32.totalorder %s11, 0
    %p73 = por %p71, %p72
    %p74 = scmp.ne.s32.totalorder %s66, %s68
    %p75 = scmp.eq.s32.totalorder %s16, 1
    %p76 = por %p74, %p75
    %p77 = scmp.ne.s32.totalorder %s68, %s69
    %p78 = scmp.eq.s32.totalorder %s16, 0
    %p79 = por %p77, %p78
    %p80 = scmp.ne.s32.totalorder %s68, %s69
    %p81 = scmp.eq.s32.totalorder %s17, 1
    %p82 = por %p80, %p81
    %p84 = scmp.ne.s32.totalorder %s69, %s83
    %p85 = scmp.eq.s32.totalorder %s17, 0
    %p86 = por %p84, %p85
    %s88 = sadd.s32 %s87, 1
    %p91 = scmp.eq.s32.totalorder %s11, 1
    %p92 = scmp.ne.s32.totalorder %s87, %s89
    %p93 = scmp.eq.s32.totalorder %s11, 0
    %p94 = por %p92, %p93
    %p95 = scmp.ne.s32.totalorder %s87, %s89
    %p96 = scmp.eq.s32.totalorder %s16, 1
    %p97 = por %p95, %p96
    %p98 = scmp.ne.s32.totalorder %s89, %s90
    %p99 = scmp.eq.s32.totalorder %s16, 0
    %p100 = por %p98, %p99
    %p101 = scmp.ne.s32.totalorder %s89, %s90
    %p102 = scmp.eq.s32.totalorder %s17, 1
    %p103 = por %p101, %p102
    %p105 = scmp.ne.s32.totalorder %s90, %s104
    %p106 = scmp.eq.s32.totalorder %s17, 0
    %p107 = por %p105, %p106
    %s109 = sadd.s32 %s108, 1
    %p112 = scmp.eq.s32.totalorder %s11, 1
    %p113 = scmp.ne.s32.totalorder %s108, %s110
    %p114 = scmp.eq.s32.totalorder %s11, 0
    %p115 = por %p113, %p114
    %p116 = scmp.ne.s32.totalorder %s108, %s110
    %p117 = scmp.eq.s32.totalorder %s16, 1
    %p118 = por %p116, %p117
    %p119 = scmp.ne.s32.totalorder %s110, %s111
    %p120 = scmp.eq.s32.totalorder %s16, 0
    %p121 = por %p119, %p120
    %p122 = scmp.ne.s32.totalorder %s110, %s111
    %p123 = scmp.eq.s32.totalorder %s17, 1
    %p124 = por %p122, %p123
    %p126 = scmp.ne.s32.totalorder %s111, %s125
    %p127 = scmp.eq.s32.totalorder %s17, 0
    %p128 = por %p126, %p127
    %s129 = ssub.s32 %s11, %s18
    %p130 = scmp.eq.s32.totalorder %s129, 0
    %s132 = sadd.s32 %s131, 1
    %s133 = scalar_select %p130, %s131, %s132
    %p136 = pneg %p130
    %p137 = scmp.eq.s32.totalorder %s11, 1
    %p138 = por %p136, %p137
    %p139 = scmp.ne.s32.totalorder %s131, %s134
    %p140 = scmp.eq.s32.totalorder %s11, 0
    %p141 = por %p139, %p140
    %p142 = scmp.ne.s32.totalorder %s131, %s134
    %p143 = scmp.eq.s32.totalorder %s16, 1
    %p144 = por %p142, %p143
    %p145 = scmp.ne.s32.totalorder %s134, %s135
    %p146 = scmp.eq.s32.totalorder %s16, 0
    %p147 = por %p145, %p146
    %p148 = scmp.ne.s32.totalorder %s134, %s135
    %p149 = scmp.eq.s32.totalorder %s17, 1
    %p150 = por %p148, %p149
    %p152 = scmp.ne.s32.totalorder %s135, %s151
    %p153 = scmp.eq.s32.totalorder %s17, 0
    %p154 = por %p152, %p153
    %p155 = scmp.le.s32.totalorder 1, %s11
    %p156 = scmp.lt.s32.totalorder %s11, 3
    %p157 = pnand %p155, %p156
    %p158 = pneg %p157
    // Predicated region
    $region9: #{tpu_custom_call.1} parent=5 // pred_check
      _
    $region10: #{tpu_custom_call.1} parent=5 // pred_check_branch
      %160 = sbr.rel (%p157) target = $region12
    $region11: #{tpu_custom_call.1} parent=5 // pred_region
      %s161 = ssub.s32 %s11, 1
      // Predicated region
      $region13: #{tpu_custom_call.1} parent=11 // pred_check
        %p162 = pneg %p58
      $region14: #{tpu_custom_call.1} parent=11 // pred_check_branch
        %164 = sbr.rel (%p162) target = $region16
      $region15: #{tpu_custom_call.1} parent=11 // pred_region
        _
      $region16: #{tpu_custom_call.1} parent=11 // pred_fallthru
        _
      // Predicated region
      $region17: #{tpu_custom_call.1} parent=11 // pred_check
        %p165 = pneg %p79
      $region18: #{tpu_custom_call.1} parent=11 // pred_check_branch
        %167 = sbr.rel (%p165) target = $region20
      $region19: #{tpu_custom_call.1} parent=11 // pred_region
        _
      $region20: #{tpu_custom_call.1} parent=11 // pred_fallthru
        _
      // Predicated region
      $region21: #{tpu_custom_call.1} parent=11 // pred_check
        %p168 = pneg %p100
      $region22: #{tpu_custom_call.1} parent=11 // pred_check_branch
        %170 = sbr.rel (%p168) target = $region24
      $region23: #{tpu_custom_call.1} parent=11 // pred_region
        _
      $region24: #{tpu_custom_call.1} parent=11 // pred_fallthru
        _
      // Predicated region
      $region25: #{tpu_custom_call.1} parent=11 // pred_check
        %p171 = pneg %p121
      $region26: #{tpu_custom_call.1} parent=11 // pred_check_branch
        %173 = sbr.rel (%p171) target = $region28
      $region27: #{tpu_custom_call.1} parent=11 // pred_region
        _
      $region28: #{tpu_custom_call.1} parent=11 // pred_fallthru
        _
    $region12: #{tpu_custom_call.1} parent=5 // pred_fallthru
      _
    %p174 = scmp.lt.s32.totalorder %s11, 2
    // Predicated region
    $region29: #{tpu_custom_call.1} parent=5 // pred_check
      %p175 = pneg %p174
    $region30: #{tpu_custom_call.1} parent=5 // pred_check_branch
      %177 = sbr.rel (%p175) target = $region32
    $region31: #{tpu_custom_call.1} parent=5 // pred_region
      // Predicated region
      $region33: #{tpu_custom_call.1} parent=31 // pred_check
        %p178 = pneg %p31
      $region34: #{tpu_custom_call.1} parent=31 // pred_check_branch
        %180 = sbr.rel (%p178) target = $region36
      $region35: #{tpu_custom_call.1} parent=31 // pred_region
        %s181 = smul.u32 16, %s11
        %p182 = scmp.lt.s32.totalorder %s181, 31
        %s183 = scalar_select %p182, %s181, 31
        %s184 = smul.addr %s183, 8
        %s185 = scalar_lea.vmem %s0, %s184
        %s186 = smul.u32 16, %s11
      $region36: #{tpu_custom_call.1} parent=31 // pred_fallthru
        _
    $region32: #{tpu_custom_call.1} parent=5 // pred_fallthru
      _
    %p187 = scmp.le.s32.totalorder 1, %s11
    %p188 = scmp.lt.s32.totalorder %s11, 3
    %p189 = pnand %p187, %p188
    %p190 = pneg %p189
    // Predicated region
    $region37: #{tpu_custom_call.1} parent=5 // pred_check
      _
    $region38: #{tpu_custom_call.1} parent=5 // pred_check_branch
      %192 = sbr.rel (%p189) target = $region40
    $region39: #{tpu_custom_call.1} parent=5 // pred_region
      %s193 = ssub.s32 %s11, 1
      %s194 = smul.u32 16, %s16
      %p195 = scmp.lt.s32.totalorder %s194, 31
      %s196 = scalar_select %p195, %s194, 31
      %s197 = smul.addr %s196, 8
      %s198 = scalar_lea.vmem %s0, %s197
      %p199 = pneg %p37
      %p200 = pneg %p34
      %p201 = pneg %p58
      %p202 = pneg %p55
      %p203 = pneg %p79
      %p204 = pneg %p76
      %p205 = pneg %p100
      %p206 = pneg %p97
      %p207 = pneg %p121
      %p208 = pneg %p118
      %p209 = pneg %p147
      %p210 = pneg %p144
      %s211 = smul.u32 16, %s16
      %p212 = scmp.lt.s32.totalorder %s211, 31
      %s213 = scalar_select %p212, %s211, 31
      %s214 = smul.addr %s213, 8
      %s215 = scalar_lea.vmem %s5, %s214
      %s216 = smul.u32 16, %s16
      %p217 = scmp.lt.s32.totalorder %s216, 31
      %s218 = scalar_select %p217, %s216, 31
      %s219 = smul.addr %s218, 8
      %s220 = scalar_lea.vmem %s0, %s219
      %s221 = smul.u32 16, %s16
      %s222 = smul.u32 16, %s16
      %p223 = scmp.lt.s32.totalorder %s222, 31
      %s224 = scalar_select %p223, %s222, 31
      %s225 = smul.addr %s224, 8
      %s226 = scalar_lea.vmem %s5, %s225
      %s227 = smul.u32 16, %s16
      %v228 = vld [vmem:[%s1] sm:$0xff]
      %v229 = vld [vmem:[%s1 + $0x8] sm:$0xff]
      %v230 = vld [vmem:[%s3] sm:$0xff]
      %v231 = vld [vmem:[%s3 + $0x8] sm:$0xff]
      %v232 = vld [vmem:[%s3 + $0x10] sm:$0xff]
      %v233 = vld [vmem:[%s3 + $0x18] sm:$0xff]
      %v234 = vld [vmem:[%s2] sm:$0x1]
      %v235 = vld [vmem:[%s4] sm:$0x1]
      %v236 = vld [vmem:[%s220] sm:$0xff]
      %v237 = vld [vmem:[%s220 + $0x8] sm:$0xff]
      %v238 = vld [vmem:[%s220 + $0x10] sm:$0xff]
      %v239 = vld [vmem:[%s220 + $0x18] sm:$0xff]
      %v240 = vld [vmem:[%s220 + $0x20] sm:$0xff]
      %v241 = vld [vmem:[%s220 + $0x28] sm:$0xff]
      %v242 = vld [vmem:[%s220 + $0x30] sm:$0xff]
      %v243 = vld [vmem:[%s220 + $0x38] sm:$0xff]
      %v244 = vld [vmem:[%s220 + $0x40] sm:$0xff]
      %v245 = vld [vmem:[%s220 + $0x48] sm:$0xff]
      %v246 = vld [vmem:[%s220 + $0x50] sm:$0xff]
      %v247 = vld [vmem:[%s220 + $0x58] sm:$0xff]
      %v248 = vld [vmem:[%s220 + $0x60] sm:$0xff]
      %v249 = vld [vmem:[%s220 + $0x68] sm:$0xff]
      %v250 = vld [vmem:[%s220 + $0x70] sm:$0xff]
      %v251 = vld [vmem:[%s220 + $0x78] sm:$0xff]
      %v253 = vlaneseq
      %v254 = vshrl.u32 %v253, 7
      %v255 = vsub.s32 0, %v254
      %v256 = vrot.slane %v234, %v255
      %vm258 = vcmask 130048
      %v260 = vsel %vm258, %v236, 0
      %v263 = vsel %vm258, %v237, 0
      %v266 = vsel %vm258, %v238, 0
      %v269 = vsel %vm258, %v239, 0
      %v272 = vsel %vm258, %v240, 0
      %v275 = vsel %vm258, %v241, 0
      %v278 = vsel %vm258, %v242, 0
      %v281 = vsel %vm258, %v243, 0
      %v284 = vsel %vm258, %v244, 0
      %v287 = vsel %vm258, %v245, 0
      %v290 = vsel %vm258, %v246, 0
      %v293 = vsel %vm258, %v247, 0
      %v296 = vsel %vm258, %v248, 0
      %v299 = vsel %vm258, %v249, 0
      %v302 = vsel %vm258, %v250, 0
      %v305 = vsel %vm258, %v251, 0
      %307 = vmatprep.subr.mxu0 0.0
      %308 = vmatpush1.msra.mxu0 %v228
      %309 = vmatprep.subr.mxu0 0.0
      %310 = vmatpush1.msra.mxu0 %v229
      %311 = vmatprep.subr.mxu0 0.0
      %312 = vmatpush1.msra.mxu0 0.0
      %313 = vmatprep.subr.mxu0 0.0
      %314 = vmatpush1.msra.mxu0 0.0
      %315 = vmatprep.subr.mxu0 0.0
      %316 = vmatpush1.msra.mxu0 0.0
      %317 = vmatprep.subr.mxu0 0.0
      %318 = vmatpush1.msra.mxu0 0.0
      %319 = vmatprep.subr.mxu0 0.0
      %320 = vmatpush1.msra.mxu0 0.0
      %321 = vmatprep.subr.mxu0 0.0
      %322 = vmatpush1.msra.mxu0 0.0
      %323 = vmatprep.subr.mxu0 0.0
      %324 = vmatpush1.msra.mxu0 0.0
      %325 = vmatprep.subr.mxu0 0.0
      %326 = vmatpush1.msra.mxu0 0.0
      %327 = vmatprep.subr.mxu0 0.0
      %328 = vmatpush1.msra.mxu0 0.0
      %329 = vmatprep.subr.mxu0 0.0
      %330 = vmatpush1.msra.mxu0 0.0
      %331 = vmatprep.subr.mxu0 0.0
      %332 = vmatpush1.msra.mxu0 0.0
      %333 = vmatprep.subr.mxu0 0.0
      %334 = vmatpush1.msra.mxu0 0.0
      %335 = vmatprep.subr.mxu0 0.0
      %336 = vmatpush1.msra.mxu0 0.0
      %337 = vmatprep.subr.mxu0 0.0
      %338 = vmatpush1.msra.mxu0 0.0
      %339 = vmatprep.subr.mxu0 0.0
      %340 = vmatpush1.msra.mxu0 0.0
      %341 = vmatprep.subr.mxu0 0.0
      %342 = vmatpush1.msra.mxu0 0.0
      %343 = vmatprep.subr.mxu0 0.0
      %344 = vmatpush1.msra.mxu0 0.0
      %345 = vmatprep.subr.mxu0 0.0
      %346 = vmatpush1.msra.mxu0 0.0
      %347 = vmatprep.subr.mxu0 0.0
      %348 = vmatpush1.msra.mxu0 0.0
      %349 = vmatprep.subr.mxu0 0.0
      %350 = vmatpush1.msra.mxu0 0.0
      %351 = vmatprep.subr.mxu0 0.0
      %352 = vmatpush1.msra.mxu0 0.0
      %353 = vmatprep.subr.mxu0 0.0
      %354 = vmatpush1.msra.mxu0 0.0
      %355 = vmatprep.subr.mxu0 0.0
      %356 = vmatpush1.msra.mxu0 0.0
      %357 = vmatprep.subr.mxu0 0.0
      %358 = vmatpush1.msra.mxu0 0.0
      %359 = vmatprep.subr.mxu0 0.0
      %360 = vmatpush1.msra.mxu0 0.0
      %361 = vmatprep.subr.mxu0 0.0
      %362 = vmatpush1.msra.mxu0 0.0
      %363 = vmatprep.subr.mxu0 0.0
      %364 = vmatpush1.msra.mxu0 0.0
      %365 = vmatprep.subr.mxu0 0.0
      %366 = vmatpush1.msra.mxu0 0.0
      %367 = vmatprep.subr.mxu0 0.0
      %368 = vmatpush1.msra.mxu0 0.0
      %369 = vmatprep.subr.mxu0 0.0
      %370 = vmatpush1.msra.mxu0 0.0
      %371 = vmatprep.mubr.f32.mxu0 0.0
      %372 = vmatmul.mubr.f32.gmra.mrb[0].mxu0 %v260
      %v373 = vpop.f32.mrb[0].mxu0
      %v374 = vadd.f32 %v256, %v373
      %v375 = vpop.f32.mrb[0].mxu0
      %376 = vmatprep.mubr.f32.mxu0 0.0
      %377 = vmatmul.mubr.f32.gmra.mrb[0].mxu0 %v263
      %v378 = vpop.f32.mrb[0].mxu0
      %v379 = vadd.f32 %v256, %v378
      %v380 = vpop.f32.mrb[0].mxu0
      %381 = vmatprep.mubr.f32.mxu0 0.0
      %382 = vmatmul.mubr.f32.gmra.mrb[0].mxu0 %v266
      %v383 = vpop.f32.mrb[0].mxu0
      %v384 = vadd.f32 %v256, %v383
      %v385 = vpop.f32.mrb[0].mxu0
      %386 = vmatprep.mubr.f32.mxu0 0.0
      %387 = vmatmul.mubr.f32.gmra.mrb[0].mxu0 %v269
      %v388 = vpop.f32.mrb[0].mxu0
      %v389 = vadd.f32 %v256, %v388
      %v390 = vpop.f32.mrb[0].mxu0
      %391 = vmatprep.mubr.f32.mxu0 0.0
      %392 = vmatmul.mubr.f32.gmra.mrb[0].mxu0 %v272
      %v393 = vpop.f32.mrb[0].mxu0
      %v394 = vadd.f32 %v256, %v393
      %v395 = vpop.f32.mrb[0].mxu0
      %396 = vmatprep.mubr.f32.mxu0 0.0
      %397 = vmatmul.mubr.f32.gmra.mrb[0].mxu0 %v275
      %v398 = vpop.f32.mrb[0].mxu0
      %v399 = vadd.f32 %v256, %v398
      %v400 = vpop.f32.mrb[0].mxu0
      %401 = vmatprep.mubr.f32.mxu0 0.0
      %402 = vmatmul.mubr.f32.gmra.mrb[0].mxu0 %v278
      %v403 = vpop.f32.mrb[0].mxu0
      %v404 = vadd.f32 %v256, %v403
      %v405 = vpop.f32.mrb[0].mxu0
      %406 = vmatprep.mubr.f32.mxu0 0.0
      %407 = vmatmul.mubr.f32.gmra.mrb[0].mxu0 %v281
      %v408 = vpop.f32.mrb[0].mxu0
      %v409 = vadd.f32 %v256, %v408
      %v410 = vpop.f32.mrb[0].mxu0
      %411 = vmatprep.mubr.f32.mxu0 0.0
      %412 = vmatmul.mubr.f32.gmra.mrb[0].mxu0 %v284
      %v413 = vpop.f32.mrb[0].mxu0
      %v414 = vadd.f32 %v256, %v413
      %v415 = vpop.f32.mrb[0].mxu0
      %416 = vmatprep.mubr.f32.mxu0 0.0
      %417 = vmatmul.mubr.f32.gmra.mrb[0].mxu0 %v287
      %v418 = vpop.f32.mrb[0].mxu0
      %v419 = vadd.f32 %v256, %v418
      %v420 = vpop.f32.mrb[0].mxu0
      %421 = vmatprep.mubr.f32.mxu0 0.0
      %422 = vmatmul.mubr.f32.gmra.mrb[0].mxu0 %v290
      %v423 = vpop.f32.mrb[0].mxu0
      %v424 = vadd.f32 %v256, %v423
      %v425 = vpop.f32.mrb[0].mxu0
      %426 = vmatprep.mubr.f32.mxu0 0.0
      %427 = vmatmul.mubr.f32.gmra.mrb[0].mxu0 %v293
      %v428 = vpop.f32.mrb[0].mxu0
      %v429 = vadd.f32 %v256, %v428
      %v430 = vpop.f32.mrb[0].mxu0
      %431 = vmatprep.mubr.f32.mxu0 0.0
      %432 = vmatmul.mubr.f32.gmra.mrb[0].mxu0 %v296
      %v433 = vpop.f32.mrb[0].mxu0
      %v434 = vadd.f32 %v256, %v433
      %v435 = vpop.f32.mrb[0].mxu0
      %436 = vmatprep.mubr.f32.mxu0 0.0
      %437 = vmatmul.mubr.f32.gmra.mrb[0].mxu0 %v299
      %v438 = vpop.f32.mrb[0].mxu0
      %v439 = vadd.f32 %v256, %v438
      %v440 = vpop.f32.mrb[0].mxu0
      %441 = vmatprep.mubr.f32.mxu0 0.0
      %442 = vmatmul.mubr.f32.gmra.mrb[0].mxu0 %v302
      %v443 = vpop.f32.mrb[0].mxu0
      %v444 = vadd.f32 %v256, %v443
      %v445 = vpop.f32.mrb[0].mxu0
      %446 = vmatprep.mubr.f32.mxu0 0.0
      %447 = vmatmul.mubr.f32.gmra.mrb[0].mxu0 %v305
      %v448 = vpop.f32.mrb[0].mxu0
      %v449 = vadd.f32 %v256, %v448
      %v450 = vpop.f32.mrb[0].mxu0
      %451 = vdwg.mxu0
      %v452 = vmax.f32 %v374, 0.0
      %v453 = vmax.f32 %v379, 0.0
      %v454 = vmax.f32 %v384, 0.0
      %v455 = vmax.f32 %v389, 0.0
      %v456 = vmax.f32 %v394, 0.0
      %v457 = vmax.f32 %v399, 0.0
      %v458 = vmax.f32 %v404, 0.0
      %v459 = vmax.f32 %v409, 0.0
      %v460 = vmax.f32 %v414, 0.0
      %v461 = vmax.f32 %v419, 0.0
      %v462 = vmax.f32 %v424, 0.0
      %v463 = vmax.f32 %v429, 0.0
      %v464 = vmax.f32 %v434, 0.0
      %v465 = vmax.f32 %v439, 0.0
      %v466 = vmax.f32 %v444, 0.0
      %v467 = vmax.f32 %v449, 0.0
      %v469 = vlaneseq
      %v470 = vshrl.u32 %v469, 7
      %v471 = vsub.s32 0, %v470
      %v472 = vrot.slane %v235, %v471
      %vm474 = vcmask 261120
      %v476 = vsel %vm474, %v452, 0
      %v479 = vsel %vm474, %v453, 0
      %v482 = vsel %vm474, %v454, 0
      %v485 = vsel %vm474, %v455, 0
      %v488 = vsel %vm474, %v456, 0
      %v491 = vsel %vm474, %v457, 0
      %v494 = vsel %vm474, %v458, 0
      %v497 = vsel %vm474, %v459, 0
      %v500 = vsel %vm474, %v460, 0
      %v503 = vsel %vm474, %v461, 0
      %v506 = vsel %vm474, %v462, 0
      %v509 = vsel %vm474, %v463, 0
      %v512 = vsel %vm474, %v464, 0
      %v515 = vsel %vm474, %v465, 0
      %v518 = vsel %vm474, %v466, 0
      %v521 = vsel %vm474, %v467, 0
      %523 = vmatprep.subr.mxu0 0.0
      %524 = vmatpush1.msra.mxu0 %v230
      %525 = vmatprep.subr.mxu0 0.0
      %526 = vmatpush1.msra.mxu0 %v231
      %527 = vmatprep.subr.mxu0 0.0
      %528 = vmatpush1.msra.mxu0 %v232
      %529 = vmatprep.subr.mxu0 0.0
      %530 = vmatpush1.msra.mxu0 %v233
      %531 = vmatprep.subr.mxu0 0.0
      %532 = vmatpush1.msra.mxu0 0.0
      %533 = vmatprep.subr.mxu0 0.0
      %534 = vmatpush1.msra.mxu0 0.0
      %535 = vmatprep.subr.mxu0 0.0
      %536 = vmatpush1.msra.mxu0 0.0
      %537 = vmatprep.subr.mxu0 0.0
      %538 = vmatpush1.msra.mxu0 0.0
      %539 = vmatprep.subr.mxu0 0.0
      %540 = vmatpush1.msra.mxu0 0.0
      %541 = vmatprep.subr.mxu0 0.0
      %542 = vmatpush1.msra.mxu0 0.0
      %543 = vmatprep.subr.mxu0 0.0
      %544 = vmatpush1.msra.mxu0 0.0
      %545 = vmatprep.subr.mxu0 0.0
      %546 = vmatpush1.msra.mxu0 0.0
      %547 = vmatprep.subr.mxu0 0.0
      %548 = vmatpush1.msra.mxu0 0.0
      %549 = vmatprep.subr.mxu0 0.0
      %550 = vmatpush1.msra.mxu0 0.0
      %551 = vmatprep.subr.mxu0 0.0
      %552 = vmatpush1.msra.mxu0 0.0
      %553 = vmatprep.subr.mxu0 0.0
      %554 = vmatpush1.msra.mxu0 0.0
      %555 = vmatprep.subr.mxu0 0.0
      %556 = vmatpush1.msra.mxu0 0.0
      %557 = vmatprep.subr.mxu0 0.0
      %558 = vmatpush1.msra.mxu0 0.0
      %559 = vmatprep.subr.mxu0 0.0
      %560 = vmatpush1.msra.mxu0 0.0
      %561 = vmatprep.subr.mxu0 0.0
      %562 = vmatpush1.msra.mxu0 0.0
      %563 = vmatprep.subr.mxu0 0.0
      %564 = vmatpush1.msra.mxu0 0.0
      %565 = vmatprep.subr.mxu0 0.0
      %566 = vmatpush1.msra.mxu0 0.0
      %567 = vmatprep.subr.mxu0 0.0
      %568 = vmatpush1.msra.mxu0 0.0
      %569 = vmatprep.subr.mxu0 0.0
      %570 = vmatpush1.msra.mxu0 0.0
      %571 = vmatprep.subr.mxu0 0.0
      %572 = vmatpush1.msra.mxu0 0.0
      %573 = vmatprep.subr.mxu0 0.0
      %574 = vmatpush1.msra.mxu0 0.0
      %575 = vmatprep.subr.mxu0 0.0
      %576 = vmatpush1.msra.mxu0 0.0
      %577 = vmatprep.subr.mxu0 0.0
      %578 = vmatpush1.msra.mxu0 0.0
      %579 = vmatprep.subr.mxu0 0.0
      %580 = vmatpush1.msra.mxu0 0.0
      %581 = vmatprep.subr.mxu0 0.0
      %582 = vmatpush1.msra.mxu0 0.0
      %583 = vmatprep.subr.mxu0 0.0
      %584 = vmatpush1.msra.mxu0 0.0
      %585 = vmatprep.subr.mxu0 0.0
      %586 = vmatpush1.msra.mxu0 0.0
      %587 = vmatprep.mubr.f32.mxu0 0.0
      %588 = vmatmul.mubr.f32.gmra.mrb[0].mxu0 %v476
      %v589 = vpop.f32.mrb[0].mxu0
      %v590 = vadd.f32 %v472, %v589
      %v591 = vpop.f32.mrb[0].mxu0
      %592 = vmatprep.mubr.f32.mxu0 0.0
      %593 = vmatmul.mubr.f32.gmra.mrb[0].mxu0 %v479
      %v594 = vpop.f32.mrb[0].mxu0
      %v595 = vadd.f32 %v472, %v594
      %v596 = vpop.f32.mrb[0].mxu0
      %597 = vmatprep.mubr.f32.mxu0 0.0
      %598 = vmatmul.mubr.f32.gmra.mrb[0].mxu0 %v482
      %v599 = vpop.f32.mrb[0].mxu0
      %v600 = vadd.f32 %v472, %v599
      %v601 = vpop.f32.mrb[0].mxu0
      %602 = vmatprep.mubr.f32.mxu0 0.0
      %603 = vmatmul.mubr.f32.gmra.mrb[0].mxu0 %v485
      %v604 = vpop.f32.mrb[0].mxu0
      %v605 = vadd.f32 %v472, %v604
      %v606 = vpop.f32.mrb[0].mxu0
      %607 = vmatprep.mubr.f32.mxu0 0.0
      %608 = vmatmul.mubr.f32.gmra.mrb[0].mxu0 %v488
      %v609 = vpop.f32.mrb[0].mxu0
      %v610 = vadd.f32 %v472, %v609
      %v611 = vpop.f32.mrb[0].mxu0
      %612 = vmatprep.mubr.f32.mxu0 0.0
      %613 = vmatmul.mubr.f32.gmra.mrb[0].mxu0 %v491
      %v614 = vpop.f32.mrb[0].mxu0
      %v615 = vadd.f32 %v472, %v614
      %v616 = vpop.f32.mrb[0].mxu0
      %617 = vmatprep.mubr.f32.mxu0 0.0
      %618 = vmatmul.mubr.f32.gmra.mrb[0].mxu0 %v494
      %v619 = vpop.f32.mrb[0].mxu0
      %v620 = vadd.f32 %v472, %v619
      %v621 = vpop.f32.mrb[0].mxu0
      %622 = vmatprep.mubr.f32.mxu0 0.0
      %623 = vmatmul.mubr.f32.gmra.mrb[0].mxu0 %v497
      %v624 = vpop.f32.mrb[0].mxu0
      %v625 = vadd.f32 %v472, %v624
      %v626 = vpop.f32.mrb[0].mxu0
      %627 = vmatprep.mubr.f32.mxu0 0.0
      %628 = vmatmul.mubr.f32.gmra.mrb[0].mxu0 %v500
      %v629 = vpop.f32.mrb[0].mxu0
      %v630 = vadd.f32 %v472, %v629
      %v631 = vpop.f32.mrb[0].mxu0
      %632 = vmatprep.mubr.f32.mxu0 0.0
      %633 = vmatmul.mubr.f32.gmra.mrb[0].mxu0 %v503
      %v634 = vpop.f32.mrb[0].mxu0
      %v635 = vadd.f32 %v472, %v634
      %v636 = vpop.f32.mrb[0].mxu0
      %637 = vmatprep.mubr.f32.mxu0 0.0
      %638 = vmatmul.mubr.f32.gmra.mrb[0].mxu0 %v506
      %v639 = vpop.f32.mrb[0].mxu0
      %v640 = vadd.f32 %v472, %v639
      %v641 = vpop.f32.mrb[0].mxu0
      %642 = vmatprep.mubr.f32.mxu0 0.0
      %643 = vmatmul.mubr.f32.gmra.mrb[0].mxu0 %v509
      %v644 = vpop.f32.mrb[0].mxu0
      %v645 = vadd.f32 %v472, %v644
      %v646 = vpop.f32.mrb[0].mxu0
      %647 = vmatprep.mubr.f32.mxu0 0.0
      %648 = vmatmul.mubr.f32.gmra.mrb[0].mxu0 %v512
      %v649 = vpop.f32.mrb[0].mxu0
      %v650 = vadd.f32 %v472, %v649
      %v651 = vpop.f32.mrb[0].mxu0
      %652 = vmatprep.mubr.f32.mxu0 0.0
      %653 = vmatmul.mubr.f32.gmra.mrb[0].mxu0 %v515
      %v654 = vpop.f32.mrb[0].mxu0
      %v655 = vadd.f32 %v472, %v654
      %v656 = vpop.f32.mrb[0].mxu0
      %657 = vmatprep.mubr.f32.mxu0 0.0
      %658 = vmatmul.mubr.f32.gmra.mrb[0].mxu0 %v518
      %v659 = vpop.f32.mrb[0].mxu0
      %v660 = vadd.f32 %v472, %v659
      %v661 = vpop.f32.mrb[0].mxu0
      %662 = vmatprep.mubr.f32.mxu0 0.0
      %663 = vmatmul.mubr.f32.gmra.mrb[0].mxu0 %v521
      %v664 = vpop.f32.mrb[0].mxu0
      %v665 = vadd.f32 %v472, %v664
      %v666 = vpop.f32.mrb[0].mxu0
      %667 = vdwg.mxu0
      %vm668 = vcmask 64512
      %669 = vst.msk [vmem:[%s226] sm:$0xff] %vm668, %v590
      %670 = vst.msk [vmem:[%s226 + $0x8] sm:$0xff] %vm668, %v595
      %671 = vst.msk [vmem:[%s226 + $0x10] sm:$0xff] %vm668, %v600
      %672 = vst.msk [vmem:[%s226 + $0x18] sm:$0xff] %vm668, %v605
      %673 = vst.msk [vmem:[%s226 + $0x20] sm:$0xff] %vm668, %v610
      %674 = vst.msk [vmem:[%s226 + $0x28] sm:$0xff] %vm668, %v615
      %675 = vst.msk [vmem:[%s226 + $0x30] sm:$0xff] %vm668, %v620
      %676 = vst.msk [vmem:[%s226 + $0x38] sm:$0xff] %vm668, %v625
      %677 = vst.msk [vmem:[%s226 + $0x40] sm:$0xff] %vm668, %v630
      %678 = vst.msk [vmem:[%s226 + $0x48] sm:$0xff] %vm668, %v635
      %679 = vst.msk [vmem:[%s226 + $0x50] sm:$0xff] %vm668, %v640
      %680 = vst.msk [vmem:[%s226 + $0x58] sm:$0xff] %vm668, %v645
      %681 = vst.msk [vmem:[%s226 + $0x60] sm:$0xff] %vm668, %v650
      %682 = vst.msk [vmem:[%s226 + $0x68] sm:$0xff] %vm668, %v655
      %683 = vst.msk [vmem:[%s226 + $0x70] sm:$0xff] %vm668, %v660
      %684 = vst.msk [vmem:[%s226 + $0x78] sm:$0xff] %vm668, %v665
      %s685 = smul.u32 16, %s16
      %p686 = scmp.lt.s32.totalorder %s685, 31
      %s687 = scalar_select %p686, %s685, 31
      %s688 = smul.addr %s687, 8
      %s689 = scalar_lea.vmem %s5, %s688
      // Predicated region
      $region41: #{tpu_custom_call.1} parent=39 // pred_check
        %p690 = pneg %p144
      $region42: #{tpu_custom_call.1} parent=39 // pred_check_branch
        %692 = sbr.rel (%p690) target = $region44
      $region43: #{tpu_custom_call.1} parent=39 // pred_region
        %s693 = smul.u32 16, %s16
      $region44: #{tpu_custom_call.1} parent=39 // pred_fallthru
        _
    $region40: #{tpu_custom_call.1} parent=5 // pred_fallthru
      _
    %p694 = scmp.le.s32.totalorder 2, %s11
    // Predicated region
    $region45: #{tpu_custom_call.1} parent=5 // pred_check
      %p695 = pneg %p694
    $region46: #{tpu_custom_call.1} parent=5 // pred_check_branch
      %697 = sbr.rel (%p695) target = $region48
    $region47: #{tpu_custom_call.1} parent=5 // pred_region
      %s698 = ssub.s32 %s11, 2
      // Predicated region
      $region49: #{tpu_custom_call.1} parent=47 // pred_check
        %p699 = pneg %p150
      $region50: #{tpu_custom_call.1} parent=47 // pred_check_branch
        %701 = sbr.rel (%p699) target = $region52
      $region51: #{tpu_custom_call.1} parent=47 // pred_region
        %s702 = smul.u32 16, %s17
        %p703 = scmp.lt.s32.totalorder %s702, 31
        %s704 = scalar_select %p703, %s702, 31
        %s705 = smul.addr %s704, 8
        %s706 = scalar_lea.vmem %s5, %s705
      $region52: #{tpu_custom_call.1} parent=47 // pred_fallthru
        _
    $region48: #{tpu_custom_call.1} parent=5 // pred_fallthru
      _
  $region6: #{tpu_custom_call.1} parent=0 // loop_footer
    %s15 = sadd.s32 1, %s11
  $region7: #{tpu_custom_call.1} parent=0 // loop_footer_branch
    %10 = sbr.rel target = $region3
  $region8: #{tpu_custom_call.1} parent=0 // loop_exit
    _

</llo_original>
